<compile_context>
chip_gen: v5e
topology: v5e:2x2
jax: 0.10.0
libtpu: 0.0.40
codegen_flags: <defaults>
</compile_context>

<pallas_src>
import functools

import jax
import jax.numpy as jnp
from jax.experimental import pallas as pl
from jax.experimental.pallas import tpu as pltpu

_LANES = 128
_SUBLANES = 8
_MAX_TILE_ROWS = 2048                    # 2048 x 128 f32 = 1 MiB / input / buffer
_VMEM_LIMIT_BYTES = 32 * 1024 * 1024     # explicit: above v5e's 16 MiB default


def _round_up(v, m):
    return ((v + m - 1) // m) * m


def _balanced_mse_kernel(x_ref, y_ref, g_ref, acc_ref, *,
                         rows, total_blocks, blocks_per_split, tile_rows, b):
    c = pl.program_id(0)        # optional core-split axis ("parallel")
    i = pl.program_id(1)        # sequential reduction axis ("arbitrary")

    @pl.when(i == 0)
    def _():
        acc_ref[...] = jnp.zeros_like(acc_ref)

    lb = c * blocks_per_split + i          # logical (un-clamped) block index

    bw = jnp.float32(b)
    aw = jnp.float32(1.0 - b)

    def weighted():
        x = x_ref[...].astype(jnp.float32)
        y = y_ref[...].astype(jnp.float32)
        g = g_ref[...].astype(jnp.float32)
        d = x - y
        # geo * (b * d^2 + (1 - b) * |d|)  -- single fused accumulator term.
        return g * (bw * (d * d) + aw * jnp.abs(d))

    def accumulate(w):
        # Fold (tile_rows, 128) -> (8, 128) per-lane partials (pure VPU vreg
        # adds) into the VMEM-resident output block; the cross-lane reduction
        # happens once, in the wrapper, on a tiny array.
        acc_ref[...] += jnp.sum(w.reshape(-1, _SUBLANES, _LANES), axis=0)[None]

    # Static: does the last logical block extend past `rows`?
    last_is_partial = (rows % tile_rows) != 0

    # Interior blocks: unmasked fast path (no iota / compare / select).
    @pl.when(lb < total_blocks - 1)
    def _fast():
        accumulate(weighted())

    # Last logical block: mask only if it is actually partial. Mask the
    # product so garbage (even NaN/Inf) in out-of-bounds rows cannot leak in.
    @pl.when(lb == total_blocks - 1)
    def _last():
        w = weighted()
        if last_is_partial:
            row0 = (total_blocks - 1) * tile_rows
            row_ids = row0 + jax.lax.broadcasted_iota(
                jnp.int32, (tile_rows, _LANES), 0)
            w = jnp.where(row_ids < rows, w, 0.0)
        accumulate(w)

    # Blocks with lb >= total_blocks (clamped duplicates from the core split)
    # fall through both branches: DMA only, no compute.


def _num_core_splits():
    """2 on dual-TensorCore parts, else 1 (v5e/v6e are single-TC)."""
    try:
        return max(1, min(2, int(getattr(jax.devices()[0], "num_cores", 1))))
    except Exception:
        return 1


def balanced_mse(x, y, geo, b=0.5, *, max_tile_rows=_MAX_TILE_ROWS):
    """Pallas implementation of balanced_Mse.forward. Returns a scalar f32."""
    assert x.shape == y.shape == geo.shape
    n_true = int(x.size)

    xf = x.reshape(-1)
    yf = y.reshape(-1)
    gf = geo.reshape(-1)

    rem = n_true % _LANES
    n_main = n_true - rem
    rows = n_main // _LANES

    bw = float(b)
    aw = 1.0 - bw
    total = jnp.float32(0.0)

    if rows > 0:
        # When numel is a multiple of 128 (the common case) this slice is a
        # full-array no-op that XLA folds away, so inputs stream straight from
        # their original buffers.  For odd sizes it costs one prefix copy;
        # removing that needs a fused-producer (allow_input_fusion) / 1-D path.
        x2 = xf[:n_main].reshape(rows, _LANES)
        y2 = yf[:n_main].reshape(rows, _LANES)
        g2 = gf[:n_main].reshape(rows, _LANES)

        # Dtype-aware sublane multiple: 8 for 4-byte, 16 for 2-byte, 32 for 1B.
        itemsize = int(min(x.dtype.itemsize, y.dtype.itemsize,
                           geo.dtype.itemsize))
        row_mult = max(_SUBLANES, 32 // max(itemsize, 1))
        tile_rows = min(max_tile_rows, _round_up(rows, row_mult))

        total_blocks = pl.cdiv(rows, tile_rows)
        num_splits = min(_num_core_splits(), total_blocks)
        blocks_per_split = pl.cdiv(total_blocks, num_splits)
        grid = (num_splits, blocks_per_split)

        def in_map(c, i):
            # Clamp so the DMA always targets an existing block; clamped
            # duplicate blocks are skipped in-kernel.
            return (jnp.minimum(c * blocks_per_split + i, total_blocks - 1), 0)

        tile_spec = pl.BlockSpec((tile_rows, _LANES), in_map)
        acc_spec = pl.BlockSpec((1, _SUBLANES, _LANES), lambda c, i: (c, 0, 0))

        kernel = functools.partial(
            _balanced_mse_kernel,
            rows=rows,
            total_blocks=total_blocks,
            blocks_per_split=blocks_per_split,
            tile_rows=tile_rows,
            b=bw,
        )

        cost = pl.CostEstimate(
            flops=8 * n_main,
            transcendentals=0,
            bytes_accessed=n_main * (x.dtype.itemsize + y.dtype.itemsize
                                     + geo.dtype.itemsize),
        )

        acc = pl.pallas_call(
            kernel,
            out_shape=jax.ShapeDtypeStruct((num_splits, _SUBLANES, _LANES),
                                           jnp.float32),
            grid_spec=pltpu.PrefetchScalarGridSpec(
                num_scalar_prefetch=0,
                grid=grid,
                in_specs=[tile_spec, tile_spec, tile_spec],
                out_specs=acc_spec,
            ),
            compiler_params=pltpu.CompilerParams(
                dimension_semantics=("parallel", "arbitrary"),
                vmem_limit_bytes=_VMEM_LIMIT_BYTES,
            ),
            cost_estimate=cost,
        )(x2, y2, g2)

        total += jnp.sum(acc)

    if rem:
        # < 128-element tail: tiny suffix slice, negligible work, plain jnp.
        xt = xf[n_main:].astype(jnp.float32)
        yt = yf[n_main:].astype(jnp.float32)
        gt = gf[n_main:].astype(jnp.float32)
        dt = xt - yt
        total += jnp.sum(gt * (jnp.float32(bw) * dt * dt
                               + jnp.float32(aw) * jnp.abs(dt)))

    return total * jnp.float32(1.0 / max(n_true, 1))


def _reference(x, y, geo, b=0.5):
    d = x.astype(jnp.float32) - y.astype(jnp.float32)
    g = geo.astype(jnp.float32)
    mse = jnp.mean(d * d * g)
    mae = jnp.mean(jnp.abs(d) * g)
    return b * mse + (1.0 - b) * mae


if __name__ == "__main__":
    key = jax.random.PRNGKey(0)
    k1, k2, k3 = jax.random.split(key, 3)

    # NCHW, small synthetic size (numel multiple of 128).
    shape = (2, 4, 16, 16)
    x = jax.random.normal(k1, shape, dtype=jnp.float32)
    y = jax.random.normal(k2, shape, dtype=jnp.float32)
    geo = jax.random.uniform(k3, shape, dtype=jnp.float32)

    out = jax.block_until_ready(balanced_mse(x, y, geo, b=0.5))
    ref = _reference(x, y, geo, b=0.5)
    assert jnp.allclose(out, ref, rtol=1e-5, atol=1e-6), (out, ref)

    # Odd, non-multiple-of-128 size: exercises masked last block + jnp tail.
    shape2 = (3, 5, 7, 11)
    x2 = jax.random.normal(k1, shape2, dtype=jnp.float32)
    y2 = jax.random.normal(k2, shape2, dtype=jnp.float32)
    g2 = jax.random.uniform(k3, shape2, dtype=jnp.float32)
    out2 = jax.block_until_ready(balanced_mse(x2, y2, g2, b=0.3))
    ref2 = _reference(x2, y2, g2, b=0.3)
    assert jnp.allclose(out2, ref2, rtol=1e-5, atol=1e-6), (out2, ref2)

    print("KERNEL_OK")
</pallas_src>

<mosaic_0001>
module attributes {stable_mosaic.version = 11 : i64} {
  func.func @_balanced_mse_kernel(%arg0: i32, %arg1: i32, %arg2: memref<16x128xf32, #tpu.memory_space<vmem>>, %arg3: memref<16x128xf32, #tpu.memory_space<vmem>>, %arg4: memref<16x128xf32, #tpu.memory_space<vmem>>, %arg5: memref<1x8x128xf32, #tpu.memory_space<vmem>>) attributes {dimension_semantics = [#tpu.dimension_semantics<parallel>, #tpu.dimension_semantics<arbitrary>], iteration_bounds = array<i64: 1, 1>, scalar_prefetch = 0 : i64, scratch_operands = 0 : i64, tpu.core_type = #tpu.core_type<tc>, window_params = [{transform_indices = @transform_0, window_bounds = array<i64: 16, 128>}, {transform_indices = @transform_1, window_bounds = array<i64: 16, 128>}, {transform_indices = @transform_2, window_bounds = array<i64: 16, 128>}, {transform_indices = @transform_3, window_bounds = array<i64: 1, 8, 128>}]} {
    %c0_i32 = arith.constant 0 : i32
    %0 = arith.cmpi eq, %arg1, %c0_i32 : i32
    %1 = arith.extui %0 : i1 to i32
    %c0_i32_0 = arith.constant 0 : i32
    %2 = arith.cmpi ne, %1, %c0_i32_0 : i32
    scf.if %2 {
      %cst_8 = arith.constant 0.000000e+00 : f32
      %11 = vector.broadcast %cst_8 : f32 to vector<1x8x128xf32>
      %c0 = arith.constant 0 : index
      %c0_9 = arith.constant 0 : index
      %c0_10 = arith.constant 0 : index
      %12 = vector.load %arg5[%c0, %c0_9, %c0_10] : memref<1x8x128xf32, #tpu.memory_space<vmem>>, vector<1x8x128xf32>
      tpu.vector_store %arg5[%c0, %c0_9, %c0_10], %11 {strides = array<i32>} : memref<1x8x128xf32, #tpu.memory_space<vmem>>, vector<1x8x128xf32>,
    } else {
    }
    %c1_i32 = arith.constant 1 : i32
    %3 = arith.muli %arg0, %c1_i32 : i32
    %4 = arith.addi %3, %arg1 : i32
    %c0_i32_1 = arith.constant 0 : i32
    %5 = arith.cmpi slt, %4, %c0_i32_1 : i32
    %6 = arith.extui %5 : i1 to i32
    %cst = arith.constant 5.000000e-01 : f32
    %cst_2 = arith.constant 5.000000e-01 : f32
    %c0_i32_3 = arith.constant 0 : i32
    %7 = arith.cmpi ne, %6, %c0_i32_3 : i32
    scf.if %7 {
      %c0 = arith.constant 0 : index
      %c0_8 = arith.constant 0 : index
      %11 = vector.load %arg2[%c0, %c0_8] : memref<16x128xf32, #tpu.memory_space<vmem>>, vector<16x128xf32>
      %c0_9 = arith.constant 0 : index
      %c0_10 = arith.constant 0 : index
      %12 = vector.load %arg3[%c0_9, %c0_10] : memref<16x128xf32, #tpu.memory_space<vmem>>, vector<16x128xf32>
      %c0_11 = arith.constant 0 : index
      %c0_12 = arith.constant 0 : index
      %13 = vector.load %arg4[%c0_11, %c0_12] : memref<16x128xf32, #tpu.memory_space<vmem>>, vector<16x128xf32>
      %14 = arith.subf %11, %12 : vector<16x128xf32>
      %15 = arith.mulf %14, %14 : vector<16x128xf32>
      %16 = vector.broadcast %cst : f32 to vector<16x128xf32>
      %17 = arith.mulf %16, %15 : vector<16x128xf32>
      %18 = math.absf %14 : vector<16x128xf32>
      %19 = vector.broadcast %cst_2 : f32 to vector<16x128xf32>
      %20 = arith.mulf %19, %18 : vector<16x128xf32>
      %21 = arith.addf %17, %20 : vector<16x128xf32>
      %22 = arith.mulf %13, %21 : vector<16x128xf32>
      %c0_13 = arith.constant 0 : index
      %c0_14 = arith.constant 0 : index
      %c0_15 = arith.constant 0 : index
      %23 = vector.load %arg5[%c0_13, %c0_14, %c0_15] : memref<1x8x128xf32, #tpu.memory_space<vmem>>, vector<1x8x128xf32>
      %24 = vector.shape_cast %22 : vector<16x128xf32> to vector<2x8x128xf32>
      %cst_16 = arith.constant dense<0.000000e+00> : vector<8x128xf32>
      %25 = vector.multi_reduction <add>, %24, %cst_16 [0] : vector<2x8x128xf32> to vector<8x128xf32>
      %26 = vector.shape_cast %25 : vector<8x128xf32> to vector<1x8x128xf32>
      %27 = arith.addf %23, %26 : vector<1x8x128xf32>
      %c0_17 = arith.constant 0 : index
      %c0_18 = arith.constant 0 : index
      %c0_19 = arith.constant 0 : index
      %28 = vector.load %arg5[%c0_17, %c0_18, %c0_19] : memref<1x8x128xf32, #tpu.memory_space<vmem>>, vector<1x8x128xf32>
      tpu.vector_store %arg5[%c0_17, %c0_18, %c0_19], %27 {strides = array<i32>} : memref<1x8x128xf32, #tpu.memory_space<vmem>>, vector<1x8x128xf32>,
    } else {
    }
    %c0_i32_4 = arith.constant 0 : i32
    %8 = arith.cmpi eq, %4, %c0_i32_4 : i32
    %9 = arith.extui %8 : i1 to i32
    %cst_5 = arith.constant 5.000000e-01 : f32
    %cst_6 = arith.constant 5.000000e-01 : f32
    %c0_i32_7 = arith.constant 0 : i32
    %10 = arith.cmpi ne, %9, %c0_i32_7 : i32
    scf.if %10 {
      %c0 = arith.constant 0 : index
      %c0_8 = arith.constant 0 : index
      %11 = vector.load %arg2[%c0, %c0_8] : memref<16x128xf32, #tpu.memory_space<vmem>>, vector<16x128xf32>
      %c0_9 = arith.constant 0 : index
      %c0_10 = arith.constant 0 : index
      %12 = vector.load %arg3[%c0_9, %c0_10] : memref<16x128xf32, #tpu.memory_space<vmem>>, vector<16x128xf32>
      %c0_11 = arith.constant 0 : index
      %c0_12 = arith.constant 0 : index
      %13 = vector.load %arg4[%c0_11, %c0_12] : memref<16x128xf32, #tpu.memory_space<vmem>>, vector<16x128xf32>
      %14 = arith.subf %11, %12 : vector<16x128xf32>
      %15 = arith.mulf %14, %14 : vector<16x128xf32>
      %16 = vector.broadcast %cst_5 : f32 to vector<16x128xf32>
      %17 = arith.mulf %16, %15 : vector<16x128xf32>
      %18 = math.absf %14 : vector<16x128xf32>
      %19 = vector.broadcast %cst_6 : f32 to vector<16x128xf32>
      %20 = arith.mulf %19, %18 : vector<16x128xf32>
      %21 = arith.addf %17, %20 : vector<16x128xf32>
      %22 = arith.mulf %13, %21 : vector<16x128xf32>
      %c0_13 = arith.constant 0 : index
      %c0_14 = arith.constant 0 : index
      %c0_15 = arith.constant 0 : index
      %23 = vector.load %arg5[%c0_13, %c0_14, %c0_15] : memref<1x8x128xf32, #tpu.memory_space<vmem>>, vector<1x8x128xf32>
      %24 = vector.shape_cast %22 : vector<16x128xf32> to vector<2x8x128xf32>
      %cst_16 = arith.constant dense<0.000000e+00> : vector<8x128xf32>
      %25 = vector.multi_reduction <add>, %24, %cst_16 [0] : vector<2x8x128xf32> to vector<8x128xf32>
      %26 = vector.shape_cast %25 : vector<8x128xf32> to vector<1x8x128xf32>
      %27 = arith.addf %23, %26 : vector<1x8x128xf32>
      %c0_17 = arith.constant 0 : index
      %c0_18 = arith.constant 0 : index
      %c0_19 = arith.constant 0 : index
      %28 = vector.load %arg5[%c0_17, %c0_18, %c0_19] : memref<1x8x128xf32, #tpu.memory_space<vmem>>, vector<1x8x128xf32>
      tpu.vector_store %arg5[%c0_17, %c0_18, %c0_19], %27 {strides = array<i32>} : memref<1x8x128xf32, #tpu.memory_space<vmem>>, vector<1x8x128xf32>,
    } else {
    }
    return
  }
  func.func @transform_0(%arg0: i32, %arg1: i32) -> (i32, i32) {
    %c1_i32 = arith.constant 1 : i32
    %0 = arith.muli %arg0, %c1_i32 : i32
    %1 = arith.addi %0, %arg1 : i32
    %c0_i32 = arith.constant 0 : i32
    %2 = arith.minsi %1, %c0_i32 : i32
    %c0_i32_0 = arith.constant 0 : i32
    %c0_i32_1 = arith.constant 0 : i32
    return %2, %c0_i32_0 : i32, i32
  }
  func.func @transform_1(%arg0: i32, %arg1: i32) -> (i32, i32) {
    %c1_i32 = arith.constant 1 : i32
    %0 = arith.muli %arg0, %c1_i32 : i32
    %1 = arith.addi %0, %arg1 : i32
    %c0_i32 = arith.constant 0 : i32
    %2 = arith.minsi %1, %c0_i32 : i32
    %c0_i32_0 = arith.constant 0 : i32
    %c0_i32_1 = arith.constant 0 : i32
    return %2, %c0_i32_0 : i32, i32
  }
  func.func @transform_2(%arg0: i32, %arg1: i32) -> (i32, i32) {
    %c1_i32 = arith.constant 1 : i32
    %0 = arith.muli %arg0, %c1_i32 : i32
    %1 = arith.addi %0, %arg1 : i32
    %c0_i32 = arith.constant 0 : i32
    %2 = arith.minsi %1, %c0_i32 : i32
    %c0_i32_0 = arith.constant 0 : i32
    %c0_i32_1 = arith.constant 0 : i32
    return %2, %c0_i32_0 : i32, i32
  }
  func.func @transform_3(%arg0: i32, %arg1: i32) -> (i32, i32, i32) {
    %c0_i32 = arith.constant 0 : i32
    %c0_i32_0 = arith.constant 0 : i32
    %c0_i32_1 = arith.constant 0 : i32
    return %arg0, %c0_i32, %c0_i32_0 : i32, i32, i32
  }
}

</mosaic_0001>

<llo_original>
// kernel: tpu_custom_call.1
$region0: #{tpu_custom_call.1}
  #allocation0 [shape = 'u32[]', space=smem, size = 0x4, offset = 0x4, fixed_abs, tag = 'smem constant byte address 0x4 - core index']
  #allocation1 [shape = 'u32[72,128]{1,0:T(1,128)}', space=vmem, size = 0x9000, scoped, tag = 'internal scratch']
  %s0 = inlined_call_operand.hbm [shape: f32[16,128], index: 0, kind: input, shape index: {}]
  %s1 = inlined_call_operand.hbm [shape: f32[16,128], index: 1, kind: input, shape index: {}]
  %s2 = inlined_call_operand.hbm [shape: f32[16,128], index: 2, kind: input, shape index: {}]
  %s3 = inlined_call_operand.hbm [shape: f32[1,8,128], index: 3, kind: output, shape index: {}]
  %s4 = sld [smem:[#allocation0]]
  $region46: #{tpu_custom_call.1} parent=0
    _
  %s6 = ssub.s32 1, %s4
  %s7 = scalar_select 0, %s6, %s4
  $region1: #{tpu_custom_call.1} parent=0
    #allocation2 [shape = 'u8[8192]{0}', space=vmem, size = 0x2000, scoped, tag = 'input window, operand 0, single buffered']
    #allocation3 [shape = 's32[1]{0}', space=sflag, size = 0x4, scoped, tag = 'scoped memory for tpu_custom_call.1']
    #allocation4 [shape = 's32[1]{0}', space=sflag, size = 0x4, scoped, tag = 'scoped memory for tpu_custom_call.1']
    #allocation5 [shape = 'u8[8192]{0}', space=vmem, size = 0x2000, scoped, tag = 'input window, operand 1, single buffered']
    #allocation6 [shape = 's32[1]{0}', space=sflag, size = 0x4, scoped, tag = 'scoped memory for tpu_custom_call.1']
    #allocation7 [shape = 'u8[8192]{0}', space=vmem, size = 0x2000, scoped, tag = 'input window, operand 2, single buffered']
    #allocation8 [shape = 'u8[4096]{0}', space=vmem, size = 0x1000, scoped, tag = 'output window, operand 0, single buffered']
    %8 = vsyncpa [#allocation3], 0
    %9 = vsyncpa [#allocation6], 0
    %10 = vsyncpa [#allocation4], 0
    // Predicated region
    $region2: #{tpu_custom_call.1} parent=1 // pred_check
      _
    $region3: #{tpu_custom_call.1} parent=1 // pred_check_branch
      %12 = sbr.rel (0) target = $region5
    $region4: #{tpu_custom_call.1} parent=1 // pred_region
      %s13 = sadd.s32 0, 0
      %p14 = scmp.lt.s32.totalorder %s13, 0
      %s15 = scalar_select %p14, %s13, 0
      %s16 = smul.u32 2, %s15
      %18 = vsyncadd [#allocation3], 0
      %s19 = smul.addr %s16, 8
      %s20 = scalar_lea.hbm %s0, %s19
      %s21 = sshll.u32 %s20, 4
      %s22 = int_to_ptr.hbm [resolvable:$true] %s21
      %s23 = sshll.u32 [#allocation2], 4
      %s24 = int_to_ptr.vmem [resolvable:$true] %s23
      %29 = dma.hbm_to_vmem [thread:$0]  %s22, 256, %s24, [#allocation3], 128, 128, 8
    $region5: #{tpu_custom_call.1} parent=1 // pred_fallthru
      _
    // Predicated region
    $region6: #{tpu_custom_call.1} parent=1 // pred_check
      _
    $region7: #{tpu_custom_call.1} parent=1 // pred_check_branch
      %31 = sbr.rel (0) target = $region9
    $region8: #{tpu_custom_call.1} parent=1 // pred_region
      %s32 = sadd.s32 0, 0
      %p33 = scmp.lt.s32.totalorder %s32, 0
      %s34 = scalar_select %p33, %s32, 0
      %s35 = smul.u32 2, %s34
      %37 = vsyncadd [#allocation6], 0
      %s38 = smul.addr %s35, 8
      %s39 = scalar_lea.hbm %s1, %s38
      %s40 = sshll.u32 %s39, 4
      %s41 = int_to_ptr.hbm [resolvable:$true] %s40
      %s42 = sshll.u32 [#allocation5], 4
      %s43 = int_to_ptr.vmem [resolvable:$true] %s42
      %48 = dma.hbm_to_vmem [thread:$0]  %s41, 256, %s43, [#allocation6], 128, 128, 8
    $region9: #{tpu_custom_call.1} parent=1 // pred_fallthru
      _
    // Predicated region
    $region10: #{tpu_custom_call.1} parent=1 // pred_check
      _
    $region11: #{tpu_custom_call.1} parent=1 // pred_check_branch
      %50 = sbr.rel (0) target = $region13
    $region12: #{tpu_custom_call.1} parent=1 // pred_region
      %s51 = sadd.s32 0, 0
      %p52 = scmp.lt.s32.totalorder %s51, 0
      %s53 = scalar_select %p52, %s51, 0
      %s54 = smul.u32 2, %s53
      %56 = vsyncadd [#allocation6], 0
      %s57 = smul.addr %s54, 8
      %s58 = scalar_lea.hbm %s2, %s57
      %s59 = sshll.u32 %s58, 4
      %s60 = int_to_ptr.hbm [resolvable:$true] %s59
      %s61 = sshll.u32 [#allocation7], 4
      %s62 = int_to_ptr.vmem [resolvable:$true] %s61
      %67 = dma.hbm_to_vmem [thread:$0]  %s60, 256, %s62, [#allocation6], 128, 128, 8
    $region13: #{tpu_custom_call.1} parent=1 // pred_fallthru
      _
    // Predicated region
    $region14: #{tpu_custom_call.1} parent=1 // pred_check
      _
    $region15: #{tpu_custom_call.1} parent=1 // pred_check_branch
      %69 = sbr.rel (0) target = $region17
    $region16: #{tpu_custom_call.1} parent=1 // pred_region
      %71 = dma.done [#allocation3], 256
    $region17: #{tpu_custom_call.1} parent=1 // pred_fallthru
      _
    // Predicated region
    $region18: #{tpu_custom_call.1} parent=1 // pred_check
      _
    $region19: #{tpu_custom_call.1} parent=1 // pred_check_branch
      %73 = sbr.rel (0) target = $region21
    $region20: #{tpu_custom_call.1} parent=1 // pred_region
      %75 = dma.done [#allocation6], 256
    $region21: #{tpu_custom_call.1} parent=1 // pred_fallthru
      _
    // Predicated region
    $region22: #{tpu_custom_call.1} parent=1 // pred_check
      _
    $region23: #{tpu_custom_call.1} parent=1 // pred_check_branch
      %77 = sbr.rel (0) target = $region25
    $region24: #{tpu_custom_call.1} parent=1 // pred_region
      %79 = dma.done [#allocation6], 256
    $region25: #{tpu_custom_call.1} parent=1 // pred_fallthru
      _
    %s80 = sadd.s32 0, 0
    %p81 = scmp.lt.s32.totalorder %s80, 0
    %s82 = scalar_select %p81, %s80, 0
    %s83 = smul.u32 2, %s82
    %s84 = sadd.s32 0, 0
    %p85 = scmp.lt.s32.totalorder %s84, 0
    %s86 = scalar_select %p85, %s84, 0
    %s87 = smul.u32 2, %s86
    %s88 = sadd.s32 0, 0
    %p89 = scmp.lt.s32.totalorder %s88, 0
    %s90 = scalar_select %p89, %s88, 0
    %s91 = smul.u32 2, %s90
    %p92 = scmp.eq.s32.totalorder 0, 0
    // Predicated region
    $region26: #{tpu_custom_call.1} parent=1 // pred_check
      %p93 = pneg %p92
    $region27: #{tpu_custom_call.1} parent=1 // pred_check_branch
      %95 = sbr.rel (%p93) target = $region29
    $region28: #{tpu_custom_call.1} parent=1 // pred_region
      %96 = vst [vmem:[#allocation8] sm:$0xff] 0.0
    $region29: #{tpu_custom_call.1} parent=1 // pred_fallthru
      _
    %s97 = sadd.s32 0, 0
    %p98 = scmp.lt.s32.totalorder %s97, 0
    // Predicated region
    $region30: #{tpu_custom_call.1} parent=1 // pred_check
      %p99 = pneg %p98
    $region31: #{tpu_custom_call.1} parent=1 // pred_check_branch
      %101 = sbr.rel (%p99) target = $region33
    $region32: #{tpu_custom_call.1} parent=1 // pred_region
      %v102 = vld [vmem:[#allocation2] sm:$0xff]
      %v103 = vld [vmem:[#allocation2 + $0x8] sm:$0xff]
      %v104 = vld [vmem:[#allocation5] sm:$0xff]
      %v105 = vld [vmem:[#allocation5 + $0x8] sm:$0xff]
      %v106 = vld [vmem:[#allocation7] sm:$0xff]
      %v107 = vld [vmem:[#allocation7 + $0x8] sm:$0xff]
      %v108 = vsub.f32 %v102, %v104
      %v109 = vsub.f32 %v103, %v105
      %v110 = vmul.f32 %v108, %v108
      %v111 = vmul.f32 %v109, %v109
      %v112 = vmul.f32 %v110, 0.5
      %v113 = vmul.f32 %v111, 0.5
      %v114 = vand.u32 2147483647, %v108
      %v115 = vand.u32 2147483647, %v109
      %v116 = vmul.f32 %v114, 0.5
      %v117 = vmul.f32 %v115, 0.5
      %v118 = vadd.f32 %v112, %v116
      %v119 = vadd.f32 %v113, %v117
      %v120 = vmul.f32 %v106, %v118
      %v121 = vmul.f32 %v107, %v119
      %v122 = vld [vmem:[#allocation8] sm:$0xff]
      %v123 = vadd.f32 %v120, %v121
      %v124 = vadd.f32 %v122, %v123
      %125 = vst [vmem:[#allocation8] sm:$0xff] %v124
    $region33: #{tpu_custom_call.1} parent=1 // pred_fallthru
      _
    %p126 = scmp.eq.s32.totalorder %s97, 0
    // Predicated region
    $region34: #{tpu_custom_call.1} parent=1 // pred_check
      %p127 = pneg %p126
    $region35: #{tpu_custom_call.1} parent=1 // pred_check_branch
      %129 = sbr.rel (%p127) target = $region37
    $region36: #{tpu_custom_call.1} parent=1 // pred_region
      %v130 = vld [vmem:[#allocation2] sm:$0xff]
      %v131 = vld [vmem:[#allocation2 + $0x8] sm:$0xff]
      %v132 = vld [vmem:[#allocation5] sm:$0xff]
      %v133 = vld [vmem:[#allocation5 + $0x8] sm:$0xff]
      %v134 = vld [vmem:[#allocation7] sm:$0xff]
      %v135 = vld [vmem:[#allocation7 + $0x8] sm:$0xff]
      %v136 = vsub.f32 %v130, %v132
      %v137 = vsub.f32 %v131, %v133
      %v138 = vmul.f32 %v136, %v136
      %v139 = vmul.f32 %v137, %v137
      %v140 = vmul.f32 %v138, 0.5
      %v141 = vmul.f32 %v139, 0.5
      %v142 = vand.u32 2147483647, %v136
      %v143 = vand.u32 2147483647, %v137
      %v144 = vmul.f32 %v142, 0.5
      %v145 = vmul.f32 %v143, 0.5
      %v146 = vadd.f32 %v140, %v144
      %v147 = vadd.f32 %v141, %v145
      %v148 = vmul.f32 %v134, %v146
      %v149 = vmul.f32 %v135, %v147
      %v150 = vld [vmem:[#allocation8] sm:$0xff]
      %v151 = vadd.f32 %v148, %v149
      %v152 = vadd.f32 %v150, %v151
      %153 = vst [vmem:[#allocation8] sm:$0xff] %v152
    $region37: #{tpu_custom_call.1} parent=1 // pred_fallthru
      _
    // Predicated region
    $region38: #{tpu_custom_call.1} parent=1 // pred_check
      _
    $region39: #{tpu_custom_call.1} parent=1 // pred_check_branch
      %155 = sbr.rel (0) target = $region41
    $region40: #{tpu_custom_call.1} parent=1 // pred_region
      %157 = vsyncadd [#allocation4], 0
      %s159 = sshll.u32 [#allocation8], 4
      %s160 = int_to_ptr.vmem [resolvable:$true] %s159
      %s161 = sshll.u32 %s3, 4
      %s162 = int_to_ptr.hbm [resolvable:$true] %s161
      %164 = dma.vmem_to_hbm [thread:$0]  %s160, 128, %s162, [#allocation4]
    $region41: #{tpu_custom_call.1} parent=1 // pred_fallthru
      _
    // Predicated region
    $region42: #{tpu_custom_call.1} parent=1 // pred_check
      _
    $region43: #{tpu_custom_call.1} parent=1 // pred_check_branch
      %166 = sbr.rel (0) target = $region45
    $region44: #{tpu_custom_call.1} parent=1 // pred_region
      %168 = dma.done [#allocation4], 128
    $region45: #{tpu_custom_call.1} parent=1 // pred_fallthru
      _
    %169 = vsyncpa [#allocation3], 1
    %170 = vsyncpa [#allocation6], 1
    %171 = vsyncpa [#allocation4], 1

</llo_original>
